<compile_context>
chip_gen: v5e
topology: v5e:2x2
jax: 0.10.0
libtpu: 0.0.40
codegen_flags: <defaults>
</compile_context>

<pallas_src>
import functools
from typing import NamedTuple

import jax
import jax.numpy as jnp
from jax.experimental import pallas as pl
from jax.experimental.pallas import tpu as pltpu


def _round_up(x: int, m: int) -> int:
    return (x + m - 1) // m * m


# ----------------------------------------------------------------------------
# One-time parameter preparation (do this at model load, NOT per forward call)
# ----------------------------------------------------------------------------
class LlamaMLPParams(NamedTuple):
    w_gu: jax.Array   # (H, 2*Ipad)  tile-interleaved [gate_j | up_j] per I-tile, K-major
    w_d: jax.Array    # (Ipad, H)    down_proj, I-major (row-contiguous per I tile)
    ti: int           # I tile the interleaving was built for


def prepare_llama_mlp_params(w_gate, w_up, w_down, *, ti=256,
                             param_dtype=jnp.bfloat16) -> LlamaMLPParams:
    """Cast / pad / transpose / fuse weights once.

    Inputs are in PyTorch nn.Linear layout:
      w_gate, w_up: (I, H)   w_down: (H, I)
    """
    I, H = w_gate.shape
    assert w_up.shape == (I, H) and w_down.shape == (H, I)
    assert ti % 128 == 0, "ti must be a multiple of 128 (MXU/lane width)"

    Ipad = _round_up(I, ti)
    pad = Ipad - I

    wg = w_gate.astype(param_dtype)
    wu = w_up.astype(param_dtype)
    wd = w_down.astype(param_dtype)
    if pad:
        # Zero padding is exact: padded gate/up cols give silu(0)*0 = 0 and the
        # matching padded down_proj rows are zero, so they contribute nothing.
        wg = jnp.pad(wg, ((0, pad), (0, 0)))
        wu = jnp.pad(wu, ((0, pad), (0, 0)))
        wd = jnp.pad(wd, ((0, 0), (0, pad)))

    nt = Ipad // ti
    # K-major (H, Ipad), then interleave gate/up per I tile of width ti so one
    # (H, 2*ti) block per grid step feeds a single MXU matmul.
    w_gu = jnp.stack(
        [wg.T.reshape(H, nt, ti), wu.T.reshape(H, nt, ti)], axis=2
    ).reshape(H, 2 * Ipad)
    w_d = wd.T  # (Ipad, H)
    return LlamaMLPParams(w_gu=w_gu, w_d=w_d, ti=ti)


# ----------------------------------------------------------------------------
# Kernel
# ----------------------------------------------------------------------------
def _llama_mlp_kernel(x_ref, wgu_ref, wd_ref, o_ref, acc_ref, *, ti):
    # x_ref   : (tm, H)       bf16 activation tile (resident over the j sweep)
    # wgu_ref : (H, 2*ti)     fused [gate | up] weight tile, K-major
    # wd_ref  : (ti, H)       down_proj weight tile, I-major
    # o_ref   : (tm, H)       output tile (resident over the j sweep)
    # acc_ref : (tm, H) f32   accumulator scratch
    j = pl.program_id(1)

    @pl.when(j == 0)
    def _():
        acc_ref[...] = jnp.zeros_like(acc_ref)

    x = x_ref[...]                                                  # (tm, H)
    # Single fused gate/up matmul on the MXU, f32 accumulation.
    gu = jnp.dot(x, wgu_ref[...], preferred_element_type=jnp.float32)  # (tm, 2*ti)
    gate = gu[:, :ti]
    up = gu[:, ti:]

    # SiLU(gate) * up in f32 (EUP sigmoid, VPU mul).
    hidden = (gate * jax.nn.sigmoid(gate)) * up                     # (tm, ti) f32

    # Partial down_proj for this I slice; accumulate in f32.
    acc_ref[...] += jnp.dot(hidden.astype(wd_ref.dtype), wd_ref[...],
                            preferred_element_type=jnp.float32)

    @pl.when(j == pl.num_programs(1) - 1)
    def _():
        o_ref[...] = acc_ref[...].astype(o_ref.dtype)


# ----------------------------------------------------------------------------
# Wrapper
# ----------------------------------------------------------------------------
def llama_mlp(x, params: LlamaMLPParams, *, tm=None, out_dtype=None,
              vmem_limit_bytes=None):
    """x: (..., H).  params from prepare_llama_mlp_params (called once)."""
    H = x.shape[-1]
    w_gu, w_d, ti = params
    Ipad, H2 = w_d.shape
    assert H2 == H and w_gu.shape == (H, 2 * Ipad)
    assert Ipad % ti == 0

    lead_shape = x.shape[:-1]
    M = 1
    for d in lead_shape:
        M *= d

    compute_dtype = w_gu.dtype
    cb = jnp.dtype(compute_dtype).itemsize
    sublane = 16 if cb == 2 else 8
    out_dtype = out_dtype or x.dtype
    ob = jnp.dtype(out_dtype).itemsize

    # M tile: big enough to clear the weight-stream roofline crossover on
    # v5e/v6e/v7x when M is large, >=2 tiles when possible (megacore / 2 TCs),
    # a single small tile for decode-style M.
    if tm is None:
        if M >= 1024:
            tm = 512
        elif M >= 512:
            tm = 256
        else:
            tm = _round_up(M, sublane)
    Mpad = _round_up(M, tm)

    x2d = x.reshape(M, H)
    if x2d.dtype != compute_dtype:
        # Activation-only cast (cheap vs weights).  Keep upstream activations
        # in bf16 to skip this entirely.
        x2d = x2d.astype(compute_dtype)
    if Mpad != M:
        x2d = jnp.pad(x2d, ((0, Mpad - M), (0, 0)))

    if vmem_limit_bytes is None:
        vmem_limit_bytes = int(
            2 * tm * H * cb            # x tiles (double-buffered)
            + 2 * H * (2 * ti) * cb    # fused gate/up weight tiles
            + 2 * ti * H * cb          # down_proj weight tiles
            + 2 * tm * H * ob          # output tiles
            + tm * H * 4               # f32 accumulator scratch
            + 4 * tm * ti * 4          # gu / hidden f32 working slabs
        ) + (12 << 20)                 # Mosaic internal scratch headroom

    kernel = functools.partial(_llama_mlp_kernel, ti=ti)

    out = pl.pallas_call(
        kernel,
        out_shape=jax.ShapeDtypeStruct((Mpad, H), out_dtype),
        grid_spec=pltpu.PrefetchScalarGridSpec(
            num_scalar_prefetch=0,
            grid=(Mpad // tm, Ipad // ti),
            in_specs=[
                pl.BlockSpec((tm, H), lambda i, j: (i, 0)),        # x (const over j)
                pl.BlockSpec((H, 2 * ti), lambda i, j: (0, j)),    # fused gate/up tile
                pl.BlockSpec((ti, H), lambda i, j: (j, 0)),        # down_proj tile
            ],
            out_specs=pl.BlockSpec((tm, H), lambda i, j: (i, 0)),
            scratch_shapes=[pltpu.VMEM((tm, H), jnp.float32)],
        ),
        compiler_params=pltpu.CompilerParams(
            dimension_semantics=("parallel", "arbitrary"),
            vmem_limit_bytes=vmem_limit_bytes,
        ),
    )(x2d, w_gu, w_d)

    if Mpad != M:
        out = out[:M]
    return out.reshape(*lead_shape, H)


# ----------------------------------------------------------------------------
# Pure-JAX reference (PyTorch semantics, same bf16-matmul / f32-acc numerics)
# ----------------------------------------------------------------------------
def llama_mlp_ref(x, w_gate, w_up, w_down, compute_dtype=jnp.bfloat16):
    xc = x.astype(compute_dtype)
    g = jnp.einsum("...h,ih->...i", xc, w_gate.astype(compute_dtype),
                   preferred_element_type=jnp.float32)
    u = jnp.einsum("...h,ih->...i", xc, w_up.astype(compute_dtype),
                   preferred_element_type=jnp.float32)
    h = (g * jax.nn.sigmoid(g)) * u
    out = jnp.einsum("...i,hi->...h", h.astype(compute_dtype),
                     w_down.astype(compute_dtype),
                     preferred_element_type=jnp.float32)
    return out.astype(x.dtype)


if __name__ == "__main__":
    # Small Llama-like config chosen to exercise padding on BOTH the M axis
    # (batch*seq = 48 -> padded to 64 with tm=32) and the I axis
    # (intermediate = 384 -> padded to 512 with ti=256), plus a 2x2 grid.
    B, S, H, I = 2, 24, 256, 384

    key = jax.random.PRNGKey(0)
    kx, kg, ku, kd = jax.random.split(key, 4)

    # Activations arrive in bf16 (as they would from the previous layer).
    x = jax.random.normal(kx, (B, S, H), dtype=jnp.float32).astype(jnp.bfloat16)
    # PyTorch nn.Linear weight layout: (out_features, in_features).
    w_gate = jax.random.normal(kg, (I, H), dtype=jnp.float32) * 0.02
    w_up = jax.random.normal(ku, (I, H), dtype=jnp.float32) * 0.02
    w_down = jax.random.normal(kd, (H, I), dtype=jnp.float32) * 0.02

    # One-time weight prep (cast/pad/transpose/fuse) -- not per forward call.
    params = prepare_llama_mlp_params(w_gate, w_up, w_down, ti=256)

    out = llama_mlp(x, params, tm=32)
    out = jax.block_until_ready(out)

    ref = llama_mlp_ref(x, w_gate, w_up, w_down)
    assert out.shape == (B, S, H), out.shape
    err = float(jnp.max(jnp.abs(out.astype(jnp.float32) - ref.astype(jnp.float32))))
    scale = float(jnp.max(jnp.abs(ref.astype(jnp.float32)))) + 1e-6
    assert err / scale < 2e-2, (err, scale)

    # TODO(synk): optionally split the I sweep across the two v7x TensorCores
    # (per-core partial sums) for decode-sized M where only one M tile exists.
    print("KERNEL_OK")
</pallas_src>

<mosaic_0001>
module attributes {stable_mosaic.version = 11 : i64} {
  func.func @_llama_mlp_kernel(%arg0: i32, %arg1: i32, %arg2: memref<32x256xbf16, #tpu.memory_space<vmem>>, %arg3: memref<256x512xbf16, #tpu.memory_space<vmem>>, %arg4: memref<256x256xbf16, #tpu.memory_space<vmem>>, %arg5: memref<32x256xbf16, #tpu.memory_space<vmem>>, %arg6: memref<32x256xf32, #tpu.memory_space<vmem>>) attributes {dimension_semantics = [#tpu.dimension_semantics<parallel>, #tpu.dimension_semantics<arbitrary>], iteration_bounds = array<i64: 2, 2>, scalar_prefetch = 0 : i64, scratch_operands = 1 : i64, tpu.core_type = #tpu.core_type<tc>, window_params = [{transform_indices = @transform_0, window_bounds = array<i64: 32, 256>}, {transform_indices = @transform_1, window_bounds = array<i64: 256, 512>}, {transform_indices = @transform_2, window_bounds = array<i64: 256, 256>}, {transform_indices = @transform_3, window_bounds = array<i64: 32, 256>}]} {
    %c0_i32 = arith.constant 0 : i32
    %0 = arith.cmpi eq, %arg1, %c0_i32 : i32
    %1 = arith.extui %0 : i1 to i32
    %c0_i32_0 = arith.constant 0 : i32
    %2 = arith.cmpi ne, %1, %c0_i32_0 : i32
    scf.if %2 {
      %cst_13 = arith.constant 0.000000e+00 : f32
      %24 = vector.broadcast %cst_13 : f32 to vector<32x256xf32>
      %c0_14 = arith.constant 0 : index
      %c0_15 = arith.constant 0 : index
      %25 = vector.load %arg6[%c0_14, %c0_15] : memref<32x256xf32, #tpu.memory_space<vmem>>, vector<32x256xf32>
      tpu.vector_store %arg6[%c0_14, %c0_15], %24 {strides = array<i32>} : memref<32x256xf32, #tpu.memory_space<vmem>>, vector<32x256xf32>,
    } else {
    }
    %c0 = arith.constant 0 : index
    %c0_1 = arith.constant 0 : index
    %3 = vector.load %arg2[%c0, %c0_1] : memref<32x256xbf16, #tpu.memory_space<vmem>>, vector<32x256xbf16>
    %c0_2 = arith.constant 0 : index
    %c0_3 = arith.constant 0 : index
    %4 = vector.load %arg3[%c0_2, %c0_3] : memref<256x512xbf16, #tpu.memory_space<vmem>>, vector<256x512xbf16>
    %cst = arith.constant dense<0.000000e+00> : vector<32x512xf32>
    %5 = tpu.matmul %3, %4, %cst {dimension_numbers = #tpu.dot_dimension_numbers<[1], [0], [0], [1], [0, 0, 1, 1], [], []>} : vector<32x256xbf16>, vector<256x512xbf16>, vector<32x512xf32> -> vector<32x512xf32>
    %6 = vector.extract_strided_slice %5 {offsets = [0, 0], sizes = [32, 256], strides = [1, 1]} : vector<32x512xf32> to vector<32x256xf32>
    %7 = vector.extract_strided_slice %5 {offsets = [0, 256], sizes = [32, 256], strides = [1, 1]} : vector<32x512xf32> to vector<32x256xf32>
    %8 = arith.negf %6 : vector<32x256xf32>
    %9 = math.exp %8 : vector<32x256xf32>
    %cst_4 = arith.constant 1.000000e+00 : f32
    %10 = vector.broadcast %cst_4 : f32 to vector<32x256xf32>
    %11 = arith.addf %10, %9 : vector<32x256xf32>
    %12 = arith.divf %10, %11 : vector<32x256xf32>
    %13 = arith.mulf %6, %12 : vector<32x256xf32>
    %14 = arith.mulf %13, %7 : vector<32x256xf32>
    %c0_5 = arith.constant 0 : index
    %c0_6 = arith.constant 0 : index
    %15 = vector.load %arg6[%c0_5, %c0_6] : memref<32x256xf32, #tpu.memory_space<vmem>>, vector<32x256xf32>
    %16 = arith.truncf %14 : vector<32x256xf32> to vector<32x256xbf16>
    %c0_7 = arith.constant 0 : index
    %c0_8 = arith.constant 0 : index
    %17 = vector.load %arg4[%c0_7, %c0_8] : memref<256x256xbf16, #tpu.memory_space<vmem>>, vector<256x256xbf16>
    %cst_9 = arith.constant dense<0.000000e+00> : vector<32x256xf32>
    %18 = tpu.matmul %16, %17, %cst_9 {dimension_numbers = #tpu.dot_dimension_numbers<[1], [0], [0], [1], [0, 0, 1, 1], [], []>} : vector<32x256xbf16>, vector<256x256xbf16>, vector<32x256xf32> -> vector<32x256xf32>
    %19 = arith.addf %15, %18 : vector<32x256xf32>
    %c0_10 = arith.constant 0 : index
    %c0_11 = arith.constant 0 : index
    %20 = vector.load %arg6[%c0_10, %c0_11] : memref<32x256xf32, #tpu.memory_space<vmem>>, vector<32x256xf32>
    tpu.vector_store %arg6[%c0_10, %c0_11], %19 {strides = array<i32>} : memref<32x256xf32, #tpu.memory_space<vmem>>, vector<32x256xf32>,
    %c1_i32 = arith.constant 1 : i32
    %21 = arith.cmpi eq, %arg1, %c1_i32 : i32
    %22 = arith.extui %21 : i1 to i32
    %c0_i32_12 = arith.constant 0 : i32
    %23 = arith.cmpi ne, %22, %c0_i32_12 : i32
    scf.if %23 {
      %c0_13 = arith.constant 0 : index
      %c0_14 = arith.constant 0 : index
      %24 = vector.load %arg6[%c0_13, %c0_14] : memref<32x256xf32, #tpu.memory_space<vmem>>, vector<32x256xf32>
      %25 = arith.truncf %24 : vector<32x256xf32> to vector<32x256xbf16>
      %c0_15 = arith.constant 0 : index
      %c0_16 = arith.constant 0 : index
      %26 = vector.load %arg5[%c0_15, %c0_16] : memref<32x256xbf16, #tpu.memory_space<vmem>>, vector<32x256xbf16>
      tpu.vector_store %arg5[%c0_15, %c0_16], %25 {strides = array<i32>} : memref<32x256xbf16, #tpu.memory_space<vmem>>, vector<32x256xbf16>,
    } else {
    }
    return
  }
  func.func @transform_0(%arg0: i32, %arg1: i32) -> (i32, i32) {
    %c0_i32 = arith.constant 0 : i32
    %c0_i32_0 = arith.constant 0 : i32
    return %arg0, %c0_i32 : i32, i32
  }
  func.func @transform_1(%arg0: i32, %arg1: i32) -> (i32, i32) {
    %c0_i32 = arith.constant 0 : i32
    %c0_i32_0 = arith.constant 0 : i32
    return %c0_i32, %arg1 : i32, i32
  }
  func.func @transform_2(%arg0: i32, %arg1: i32) -> (i32, i32) {
    %c0_i32 = arith.constant 0 : i32
    %c0_i32_0 = arith.constant 0 : i32
    return %arg1, %c0_i32 : i32, i32
  }
  func.func @transform_3(%arg0: i32, %arg1: i32) -> (i32, i32) {
    %c0_i32 = arith.constant 0 : i32
    %c0_i32_0 = arith.constant 0 : i32
    return %arg0, %c0_i32 : i32, i32
  }
}

</mosaic_0001>

<llo_original>
// kernel: tpu_custom_call.1
$region0: #{tpu_custom_call.1}
  #allocation0 [shape = 'u32[]', space=smem, size = 0x4, offset = 0x4, fixed_abs, tag = 'smem constant byte address 0x4 - core index']
  #allocation1 [shape = 'u32[72,128]{1,0:T(1,128)}', space=vmem, size = 0x9000, scoped, tag = 'internal scratch']
  #allocation2 [shape = 'f32[32,256]{1,0:T(8,128)}', space=vmem, size = 0x8000, scoped, tag = 'scratch operand']
  %s0 = inlined_call_operand.hbm [shape: bf16[64,256], index: 0, kind: input, shape index: {}]
  %s1 = inlined_call_operand.hbm [shape: bf16[256,1024], index: 1, kind: input, shape index: {}]
  %s2 = inlined_call_operand.hbm [shape: bf16[512,256], index: 2, kind: input, shape index: {}]
  %s3 = inlined_call_operand.hbm [shape: bf16[64,256], index: 3, kind: output, shape index: {}]
  %s4 = sld [smem:[#allocation0]]
  $region65: #{tpu_custom_call.1} parent=0
    _
  %s6 = ssub.s32 1, %s4
  %s7 = scalar_select 0, %s6, %s4
  $region1: #{tpu_custom_call.1} parent=0
    #allocation3 [shape = 'u8[32768]{0}', space=vmem, size = 0x8000, scoped, tag = 'input window, operand 0']
    #allocation4 [shape = 's32[2]{0}', space=sflag, size = 0x8, scoped, tag = 'scoped memory for tpu_custom_call.1']
    #allocation5 [shape = 's32[2]{0}', space=sflag, size = 0x8, scoped, tag = 'scoped memory for tpu_custom_call.1']
    #allocation6 [shape = 'u8[524288]{0}', space=vmem, size = 0x80000, scoped, tag = 'input window, operand 1']
    #allocation7 [shape = 's32[2]{0}', space=sflag, size = 0x8, scoped, tag = 'scoped memory for tpu_custom_call.1']
    #allocation8 [shape = 'u8[262144]{0}', space=vmem, size = 0x40000, scoped, tag = 'input window, operand 2']
    #allocation9 [shape = 'u8[32768]{0}', space=vmem, size = 0x8000, scoped, tag = 'output window, operand 0']
    %8 = vsyncpa [#allocation4], 0
    %s9 = scalar_lea.sflag [#allocation4], 1
    %10 = vsyncpa %s9, 0
    %11 = vsyncpa [#allocation7], 0
    %s12 = scalar_lea.sflag [#allocation7], 1
    %13 = vsyncpa %s12, 0
    %14 = vsyncpa [#allocation5], 0
    %s15 = scalar_lea.sflag [#allocation5], 1
    %16 = vsyncpa %s15, 0
    loop: start=0, step=1, limit=6
    $region2: #{tpu_custom_call.1} parent=1 // loop_pre_header
      _
    $region3: #{tpu_custom_call.1} parent=1 // loop_header
      %s18 = sphi 0, %s22
      %p19 = scmp.ge.s32.totalorder %s18, 6
      %s25 = sphi 0, %s37
      %s26 = sphi 0, %s33
      %s27 = sphi 0, %s25
      %s28 = sphi 0, %s26
      %s29 = sphi 0, %s27
      %s30 = sphi 0, %s28
      %s40 = sphi 0, %s42
      %s43 = sphi 0, %s40
      %s44 = sphi 0, %s43
      %s60 = sphi 0, %s44
      %s66 = sphi 0, %s68
      %s69 = sphi 0, %s66
      %s70 = sphi 0, %s69
      %s86 = sphi 0, %s70
      %s92 = sphi 0, %s94
      %s95 = sphi 0, %s92
      %s96 = sphi 0, %s95
      %s112 = sphi 0, %s96
      %s118 = sphi 0, %s120
      %s121 = sphi 0, %s118
      %s122 = sphi 0, %s121
      %s138 = sphi 0, %s122
    $region4: #{tpu_custom_call.1} parent=1 // loop_header_branch
      %21 = sbr.rel (%p19) target = $region8
    $region5: #{tpu_custom_call.1} parent=1 // loop_body
      %s23 = ssub.s32 %s18, 1
      %s24 = ssub.s32 %s18, 2
      %s31 = sadd.s32 1, %s26
      %p32 = scmp.ge.s32.totalorder %s31, 2
      %s33 = scalar_select %p32, 0, %s31
      %s34 = sadd.s32 1, %s25
      %s35 = scalar_select %p32, %s34, %s25
      %p36 = scmp.ge.s32.totalorder %s35, 2
      %s37 = scalar_select %p36, 0, %s35
      %s38 = ssub.s32 %s25, %s37
      %p39 = scmp.eq.s32.totalorder %s38, 0
      %s41 = sadd.s32 %s40, 1
      %s42 = scalar_select %p39, %s40, %s41
      %p45 = pneg %p39
      %p46 = scmp.eq.s32.totalorder %s18, 3
      %p47 = por %p45, %p46
      %p48 = scmp.ne.s32.totalorder %s40, %s43
      %p49 = scmp.eq.s32.totalorder %s18, 0
      %p50 = por %p48, %p49
      %p51 = scmp.ne.s32.totalorder %s40, %s43
      %p52 = scmp.eq.s32.totalorder %s23, 3
      %p53 = por %p51, %p52
      %p54 = scmp.ne.s32.totalorder %s43, %s44
      %p55 = scmp.eq.s32.totalorder %s23, 0
      %p56 = por %p54, %p55
      %p57 = scmp.ne.s32.totalorder %s43, %s44
      %p58 = scmp.eq.s32.totalorder %s24, 3
      %p59 = por %p57, %p58
      %p61 = scmp.ne.s32.totalorder %s44, %s60
      %p62 = scmp.eq.s32.totalorder %s24, 0
      %p63 = por %p61, %p62
      %s64 = ssub.s32 %s26, %s33
      %p65 = scmp.eq.s32.totalorder %s64, 0
      %s67 = sadd.s32 %s66, 1
      %s68 = scalar_select %p65, %s66, %s67
      %p71 = pneg %p65
      %p72 = scmp.eq.s32.totalorder %s18, 3
      %p73 = por %p71, %p72
      %p74 = scmp.ne.s32.totalorder %s66, %s69
      %p75 = scmp.eq.s32.totalorder %s18, 0
      %p76 = por %p74, %p75
      %p77 = scmp.ne.s32.totalorder %s66, %s69
      %p78 = scmp.eq.s32.totalorder %s23, 3
      %p79 = por %p77, %p78
      %p80 = scmp.ne.s32.totalorder %s69, %s70
      %p81 = scmp.eq.s32.totalorder %s23, 0
      %p82 = por %p80, %p81
      %p83 = scmp.ne.s32.totalorder %s69, %s70
      %p84 = scmp.eq.s32.totalorder %s24, 3
      %p85 = por %p83, %p84
      %p87 = scmp.ne.s32.totalorder %s70, %s86
      %p88 = scmp.eq.s32.totalorder %s24, 0
      %p89 = por %p87, %p88
      %s90 = ssub.s32 %s26, %s33
      %p91 = scmp.eq.s32.totalorder %s90, 0
      %s93 = sadd.s32 %s92, 1
      %s94 = scalar_select %p91, %s92, %s93
      %p97 = pneg %p91
      %p98 = scmp.eq.s32.totalorder %s18, 3
      %p99 = por %p97, %p98
      %p100 = scmp.ne.s32.totalorder %s92, %s95
      %p101 = scmp.eq.s32.totalorder %s18, 0
      %p102 = por %p100, %p101
      %p103 = scmp.ne.s32.totalorder %s92, %s95
      %p104 = scmp.eq.s32.totalorder %s23, 3
      %p105 = por %p103, %p104
      %p106 = scmp.ne.s32.totalorder %s95, %s96
      %p107 = scmp.eq.s32.totalorder %s23, 0
      %p108 = por %p106, %p107
      %p109 = scmp.ne.s32.totalorder %s95, %s96
      %p110 = scmp.eq.s32.totalorder %s24, 3
      %p111 = por %p109, %p110
      %p113 = scmp.ne.s32.totalorder %s96, %s112
      %p114 = scmp.eq.s32.totalorder %s24, 0
      %p115 = por %p113, %p114
      %s116 = ssub.s32 %s25, %s37
      %p117 = scmp.eq.s32.totalorder %s116, 0
      %s119 = sadd.s32 %s118, 1
      %s120 = scalar_select %p117, %s118, %s119
      %p123 = pneg %p117
      %p124 = scmp.eq.s32.totalorder %s18, 3
      %p125 = por %p123, %p124
      %p126 = scmp.ne.s32.totalorder %s118, %s121
      %p127 = scmp.eq.s32.totalorder %s18, 0
      %p128 = por %p126, %p127
      %p129 = scmp.ne.s32.totalorder %s118, %s121
      %p130 = scmp.eq.s32.totalorder %s23, 3
      %p131 = por %p129, %p130
      %p132 = scmp.ne.s32.totalorder %s121, %s122
      %p133 = scmp.eq.s32.totalorder %s23, 0
      %p134 = por %p132, %p133
      %p135 = scmp.ne.s32.totalorder %s121, %s122
      %p136 = scmp.eq.s32.totalorder %s24, 3
      %p137 = por %p135, %p136
      %p139 = scmp.ne.s32.totalorder %s122, %s138
      %p140 = scmp.eq.s32.totalorder %s24, 0
      %p141 = por %p139, %p140
      %p142 = scmp.le.s32.totalorder 1, %s18
      %p143 = scmp.lt.s32.totalorder %s18, 5
      %p144 = pnand %p142, %p143
      %p145 = pneg %p144
      // Predicated region
      $region9: #{tpu_custom_call.1} parent=5 // pred_check
        _
      $region10: #{tpu_custom_call.1} parent=5 // pred_check_branch
        %147 = sbr.rel (%p144) target = $region12
      $region11: #{tpu_custom_call.1} parent=5 // pred_region
        %s148 = ssub.s32 %s18, 1
      $region12: #{tpu_custom_call.1} parent=5 // pred_fallthru
        _
      %p149 = scmp.lt.s32.totalorder %s18, 4
      // Predicated region
      $region13: #{tpu_custom_call.1} parent=5 // pred_check
        %p150 = pneg %p149
      $region14: #{tpu_custom_call.1} parent=5 // pred_check_branch
        %152 = sbr.rel (%p150) target = $region16
      $region15: #{tpu_custom_call.1} parent=5 // pred_region
        // Predicated region
        $region17: #{tpu_custom_call.1} parent=15 // pred_check
          %p153 = pneg %p50
        $region18: #{tpu_custom_call.1} parent=15 // pred_check_branch
          %155 = sbr.rel (%p153) target = $region20
        $region19: #{tpu_custom_call.1} parent=15 // pred_region
          %s156 = sand.u32 %s40, 1
          %s157 = scalar_lea.sflag [#allocation4], %s156
          %s158 = sand.u32 %s40, 1
          %s159 = smul.addr %s158, 32
          %s160 = scalar_lea.vmem [#allocation3], %s159
          %s161 = smul.u32 4, %s25
          %163 = vsyncadd %s157, 0
          %s164 = smul.addr %s161, 2
          %s165 = smul.addr %s164, 4
          %s166 = scalar_lea.hbm %s0, %s165
          %s167 = sshll.u32 %s166, 4
          %s168 = int_to_ptr.hbm [resolvable:$true] %s167
          %s169 = sshll.u32 %s160, 4
          %s170 = int_to_ptr.vmem [resolvable:$true] %s169
          %175 = dma.hbm_to_vmem [thread:$0]  %s168, 512, %s170, %s157, 128, 128, 8
        $region20: #{tpu_custom_call.1} parent=15 // pred_fallthru
          _
        // Predicated region
        $region21: #{tpu_custom_call.1} parent=15 // pred_check
          %p176 = pneg %p76
        $region22: #{tpu_custom_call.1} parent=15 // pred_check_branch
          %178 = sbr.rel (%p176) target = $region24
        $region23: #{tpu_custom_call.1} parent=15 // pred_region
          %s179 = sand.u32 %s18, 1
          %s180 = scalar_lea.sflag [#allocation7], %s179
          %s181 = sand.u32 %s66, 1
          %s182 = smul.addr %s181, 512
          %s183 = scalar_lea.vmem [#allocation6], %s182
          %s184 = smul.u32 4, %s26
          %186 = vsyncadd %s180, 0
          %s187 = smul.addr %s184, 4
          %s188 = scalar_lea.hbm %s1, %s187
          %s189 = sshll.u32 %s188, 4
          %s190 = int_to_ptr.hbm [resolvable:$true] %s189
          %s191 = sshll.u32 %s183, 4
          %s192 = int_to_ptr.vmem [resolvable:$true] %s191
          %197 = dma.hbm_to_vmem [thread:$0]  %s190, 8192, %s192, %s180, 512, 256, 16
        $region24: #{tpu_custom_call.1} parent=15 // pred_fallthru
          _
        // Predicated region
        $region25: #{tpu_custom_call.1} parent=15 // pred_check
          %p198 = pneg %p102
        $region26: #{tpu_custom_call.1} parent=15 // pred_check_branch
          %200 = sbr.rel (%p198) target = $region28
        $region27: #{tpu_custom_call.1} parent=15 // pred_region
          %s201 = sand.u32 %s18, 1
          %s202 = scalar_lea.sflag [#allocation7], %s201
          %s203 = sand.u32 %s92, 1
          %s204 = smul.addr %s203, 256
          %s205 = scalar_lea.vmem [#allocation8], %s204
          %s206 = smul.u32 32, %s26
          %208 = vsyncadd %s202, 0
          %s209 = smul.addr %s206, 2
          %s210 = smul.addr %s209, 4
          %s211 = scalar_lea.hbm %s2, %s210
          %s212 = sshll.u32 %s211, 4
          %s213 = int_to_ptr.hbm [resolvable:$true] %s212
          %s214 = sshll.u32 %s205, 4
          %s215 = int_to_ptr.vmem [resolvable:$true] %s214
          %220 = dma.hbm_to_vmem [thread:$0]  %s213, 4096, %s215, %s202, 128, 128, 8
        $region28: #{tpu_custom_call.1} parent=15 // pred_fallthru
          _
      $region16: #{tpu_custom_call.1} parent=5 // pred_fallthru
        _
      %p221 = scmp.le.s32.totalorder 1, %s18
      %p222 = scmp.lt.s32.totalorder %s18, 5
      %p223 = pnand %p221, %p222
      %p224 = pneg %p223
      // Predicated region
      $region29: #{tpu_custom_call.1} parent=5 // pred_check
        _
      $region30: #{tpu_custom_call.1} parent=5 // pred_check_branch
        %226 = sbr.rel (%p223) target = $region32
      $region31: #{tpu_custom_call.1} parent=5 // pred_region
        %s227 = ssub.s32 %s18, 1
        %s228 = sand.u32 %s43, 1
        %s229 = scalar_lea.sflag [#allocation4], %s228
        %s230 = sand.u32 %s43, 1
        %s231 = smul.addr %s230, 32
        %s232 = scalar_lea.vmem [#allocation3], %s231
        // Predicated region
        $region33: #{tpu_custom_call.1} parent=31 // pred_check
          %p233 = pneg %p56
        $region34: #{tpu_custom_call.1} parent=31 // pred_check_branch
          %235 = sbr.rel (%p233) target = $region36
        $region35: #{tpu_custom_call.1} parent=31 // pred_region
          %237 = dma.done %s229, 512
        $region36: #{tpu_custom_call.1} parent=31 // pred_fallthru
          _
        %s238 = sand.u32 %s23, 1
        %s239 = scalar_lea.sflag [#allocation7], %s238
        %s240 = sand.u32 %s69, 1
        %s241 = smul.addr %s240, 512
        %s242 = scalar_lea.vmem [#allocation6], %s241
        // Predicated region
        $region37: #{tpu_custom_call.1} parent=31 // pred_check
          %p243 = pneg %p82
        $region38: #{tpu_custom_call.1} parent=31 // pred_check_branch
          %245 = sbr.rel (%p243) target = $region40
        $region39: #{tpu_custom_call.1} parent=31 // pred_region
          %247 = dma.done %s239, 8192
        $region40: #{tpu_custom_call.1} parent=31 // pred_fallthru
          _
        %s248 = sand.u32 %s23, 1
        %s249 = scalar_lea.sflag [#allocation7], %s248
        %s250 = sand.u32 %s95, 1
        %s251 = smul.addr %s250, 256
        %s252 = scalar_lea.vmem [#allocation8], %s251
        // Predicated region
        $region41: #{tpu_custom_call.1} parent=31 // pred_check
          %p253 = pneg %p108
        $region42: #{tpu_custom_call.1} parent=31 // pred_check_branch
          %255 = sbr.rel (%p253) target = $region44
        $region43: #{tpu_custom_call.1} parent=31 // pred_region
          %257 = dma.done %s249, 4096
        $region44: #{tpu_custom_call.1} parent=31 // pred_fallthru
          _
        %s258 = sand.u32 %s43, 1
        %s259 = scalar_lea.sflag [#allocation4], %s258
        %s260 = sand.u32 %s43, 1
        %s261 = smul.addr %s260, 32
        %s262 = scalar_lea.vmem [#allocation3], %s261
        %p263 = pneg %p56
        %p264 = pneg %p53
        %s265 = sand.u32 %s23, 1
        %s266 = scalar_lea.sflag [#allocation7], %s265
        %s267 = sand.u32 %s69, 1
        %s268 = smul.addr %s267, 512
        %s269 = scalar_lea.vmem [#allocation6], %s268
        %p270 = pneg %p82
        %p271 = pneg %p79
        %s272 = sand.u32 %s23, 1
        %s273 = scalar_lea.sflag [#allocation7], %s272
        %s274 = sand.u32 %s95, 1
        %s275 = smul.addr %s274, 256
        %s276 = scalar_lea.vmem [#allocation8], %s275
        %p277 = pneg %p108
        %p278 = pneg %p105
        %p279 = pneg %p134
        %p280 = pneg %p131
        %s281 = sand.u32 %s121, 1
        %s282 = scalar_lea.sflag [#allocation5], %s281
        %s283 = sand.u32 %s121, 1
        %s284 = smul.addr %s283, 32
        %s285 = scalar_lea.vmem [#allocation9], %s284
        %s286 = smul.u32 4, %s27
        %s287 = smul.u32 4, %s28
        %s288 = smul.u32 32, %s28
        %s289 = smul.u32 4, %s27
        %p290 = scmp.eq.s32.totalorder %s28, 0
        // Predicated region
        $region45: #{tpu_custom_call.1} parent=31 // pred_check
          %p291 = pneg %p290
        $region46: #{tpu_custom_call.1} parent=31 // pred_check_branch
          %293 = sbr.rel (%p291) target = $region48
        $region47: #{tpu_custom_call.1} parent=31 // pred_region
          %294 = vst [vmem:[#allocation2] sm:$0xff] 0.0
          %295 = vst [vmem:[#allocation2 + $0x8] sm:$0xff] 0.0
          %296 = vst [vmem:[#allocation2 + $0x10] sm:$0xff] 0.0
          %297 = vst [vmem:[#allocation2 + $0x18] sm:$0xff] 0.0
          %298 = vst [vmem:[#allocation2 + $0x20] sm:$0xff] 0.0
          %299 = vst [vmem:[#allocation2 + $0x28] sm:$0xff] 0.0
          %300 = vst [vmem:[#allocation2 + $0x30] sm:$0xff] 0.0
          %301 = vst [vmem:[#allocation2 + $0x38] sm:$0xff] 0.0
        $region48: #{tpu_custom_call.1} parent=31 // pred_fallthru
          _
        %v302 = vld [vmem:[%s232] sm:$0xff]
        %v303 = vld [vmem:[%s232 + $0x8] sm:$0xff]
        %v304 = vld [vmem:[%s232 + $0x10] sm:$0xff]
        %v305 = vld [vmem:[%s232 + $0x18] sm:$0xff]
        %v306 = vld [vmem:[%s242] sm:$0xff]
        %v307 = vld [vmem:[%s242 + $0x8] sm:$0xff]
        %v308 = vld [vmem:[%s242 + $0x10] sm:$0xff]
        %v309 = vld [vmem:[%s242 + $0x18] sm:$0xff]
        %v310 = vld [vmem:[%s242 + $0x20] sm:$0xff]
        %v311 = vld [vmem:[%s242 + $0x28] sm:$0xff]
        %v312 = vld [vmem:[%s242 + $0x30] sm:$0xff]
        %v313 = vld [vmem:[%s242 + $0x38] sm:$0xff]
        %v314 = vld [vmem:[%s242 + $0x40] sm:$0xff]
        %v315 = vld [vmem:[%s242 + $0x48] sm:$0xff]
        %v316 = vld [vmem:[%s242 + $0x50] sm:$0xff]
        %v317 = vld [vmem:[%s242 + $0x58] sm:$0xff]
        %v318 = vld [vmem:[%s242 + $0x60] sm:$0xff]
        %v319 = vld [vmem:[%s242 + $0x68] sm:$0xff]
        %v320 = vld [vmem:[%s242 + $0x70] sm:$0xff]
        %v321 = vld [vmem:[%s242 + $0x78] sm:$0xff]
        %v322 = vld [vmem:[%s242 + $0x80] sm:$0xff]
        %v323 = vld [vmem:[%s242 + $0x88] sm:$0xff]
        %v324 = vld [vmem:[%s242 + $0x90] sm:$0xff]
        %v325 = vld [vmem:[%s242 + $0x98] sm:$0xff]
        %v326 = vld [vmem:[%s242 + $0xa0] sm:$0xff]
        %v327 = vld [vmem:[%s242 + $0xa8] sm:$0xff]
        %v328 = vld [vmem:[%s242 + $0xb0] sm:$0xff]
        %v329 = vld [vmem:[%s242 + $0xb8] sm:$0xff]
        %v330 = vld [vmem:[%s242 + $0xc0] sm:$0xff]
        %v331 = vld [vmem:[%s242 + $0xc8] sm:$0xff]
        %v332 = vld [vmem:[%s242 + $0xd0] sm:$0xff]
        %v333 = vld [vmem:[%s242 + $0xd8] sm:$0xff]
        %v334 = vld [vmem:[%s242 + $0xe0] sm:$0xff]
        %v335 = vld [vmem:[%s242 + $0xe8] sm:$0xff]
        %v336 = vld [vmem:[%s242 + $0xf0] sm:$0xff]
        %v337 = vld [vmem:[%s242 + $0xf8] sm:$0xff]
        %v338 = vld [vmem:[%s242 + $0x100] sm:$0xff]
        %v339 = vld [vmem:[%s242 + $0x108] sm:$0xff]
        %v340 = vld [vmem:[%s242 + $0x110] sm:$0xff]
        %v341 = vld [vmem:[%s242 + $0x118] sm:$0xff]
        %v342 = vld [vmem:[%s242 + $0x120] sm:$0xff]
        %v343 = vld [vmem:[%s242 + $0x128] sm:$0xff]
        %v344 = vld [vmem:[%s242 + $0x130] sm:$0xff]
        %v345 = vld [vmem:[%s242 + $0x138] sm:$0xff]
        %v346 = vld [vmem:[%s242 + $0x140] sm:$0xff]
        %v347 = vld [vmem:[%s242 + $0x148] sm:$0xff]
        %v348 = vld [vmem:[%s242 + $0x150] sm:$0xff]
        %v349 = vld [vmem:[%s242 + $0x158] sm:$0xff]
        %v350 = vld [vmem:[%s242 + $0x160] sm:$0xff]
        %v351 = vld [vmem:[%s242 + $0x168] sm:$0xff]
        %v352 = vld [vmem:[%s242 + $0x170] sm:$0xff]
        %v353 = vld [vmem:[%s242 + $0x178] sm:$0xff]
        %v354 = vld [vmem:[%s242 + $0x180] sm:$0xff]
        %v355 = vld [vmem:[%s242 + $0x188] sm:$0xff]
        %v356 = vld [vmem:[%s242 + $0x190] sm:$0xff]
        %v357 = vld [vmem:[%s242 + $0x198] sm:$0xff]
        %v358 = vld [vmem:[%s242 + $0x1a0] sm:$0xff]
        %v359 = vld [vmem:[%s242 + $0x1a8] sm:$0xff]
        %v360 = vld [vmem:[%s242 + $0x1b0] sm:$0xff]
        %v361 = vld [vmem:[%s242 + $0x1b8] sm:$0xff]
        %v362 = vld [vmem:[%s242 + $0x1c0] sm:$0xff]
        %v363 = vld [vmem:[%s242 + $0x1c8] sm:$0xff]
        %v364 = vld [vmem:[%s242 + $0x1d0] sm:$0xff]
        %v365 = vld [vmem:[%s242 + $0x1d8] sm:$0xff]
        %v366 = vld [vmem:[%s242 + $0x1e0] sm:$0xff]
        %v367 = vld [vmem:[%s242 + $0x1e8] sm:$0xff]
        %v368 = vld [vmem:[%s242 + $0x1f0] sm:$0xff]
        %v369 = vld [vmem:[%s242 + $0x1f8] sm:$0xff]
        %v374 = vunpack.c.l.b16 %v302
        %v375 = vunpack.c.h.b16 %v302
        %v376 = vunpack.c.l.b16 %v303
        %v377 = vunpack.c.h.b16 %v303
        %v378 = vunpack.c.l.b16 %v304
        %v379 = vunpack.c.h.b16 %v304
        %v380 = vunpack.c.l.b16 %v305
        %v381 = vunpack.c.h.b16 %v305
        %v382 = vpack.c.b16 %v376, %v374
        %v383 = vpack.c.b16 %v377, %v375
        %v384 = vpack.c.b16 %v380, %v378
        %v385 = vpack.c.b16 %v381, %v379
        %v454 = vunpack.c.l.b16 %v306
        %v455 = vunpack.c.h.b16 %v306
        %v456 = vunpack.c.l.b16 %v307
        %v457 = vunpack.c.h.b16 %v307
        %v458 = vunpack.c.l.b16 %v308
        %v459 = vunpack.c.h.b16 %v308
        %v460 = vunpack.c.l.b16 %v309
        %v461 = vunpack.c.h.b16 %v309
        %v462 = vunpack.c.l.b16 %v310
        %v463 = vunpack.c.h.b16 %v310
        %v464 = vunpack.c.l.b16 %v311
        %v465 = vunpack.c.h.b16 %v311
        %v466 = vunpack.c.l.b16 %v312
        %v467 = vunpack.c.h.b16 %v312
        %v468 = vunpack.c.l.b16 %v313
        %v469 = vunpack.c.h.b16 %v313
        %v470 = vunpack.c.l.b16 %v314
        %v471 = vunpack.c.h.b16 %v314
        %v472 = vunpack.c.l.b16 %v315
        %v473 = vunpack.c.h.b16 %v315
        %v474 = vunpack.c.l.b16 %v316
        %v475 = vunpack.c.h.b16 %v316
        %v476 = vunpack.c.l.b16 %v317
        %v477 = vunpack.c.h.b16 %v317
        %v478 = vunpack.c.l.b16 %v318
        %v479 = vunpack.c.h.b16 %v318
        %v480 = vunpack.c.l.b16 %v319
        %v481 = vunpack.c.h.b16 %v319
        %v482 = vunpack.c.l.b16 %v320
        %v483 = vunpack.c.h.b16 %v320
        %v484 = vunpack.c.l.b16 %v321
        %v485 = vunpack.c.h.b16 %v321
        %v486 = vunpack.c.l.b16 %v322
        %v487 = vunpack.c.h.b16 %v322
        %v488 = vunpack.c.l.b16 %v323
        %v489 = vunpack.c.h.b16 %v323
        %v490 = vunpack.c.l.b16 %v324
        %v491 = vunpack.c.h.b16 %v324
        %v492 = vunpack.c.l.b16 %v325
        %v493 = vunpack.c.h.b16 %v325
        %v494 = vunpack.c.l.b16 %v326
        %v495 = vunpack.c.h.b16 %v326
        %v496 = vunpack.c.l.b16 %v327
        %v497 = vunpack.c.h.b16 %v327
        %v498 = vunpack.c.l.b16 %v328
        %v499 = vunpack.c.h.b16 %v328
        %v500 = vunpack.c.l.b16 %v329
        %v501 = vunpack.c.h.b16 %v329
        %v502 = vunpack.c.l.b16 %v330
        %v503 = vunpack.c.h.b16 %v330
        %v504 = vunpack.c.l.b16 %v331
        %v505 = vunpack.c.h.b16 %v331
        %v506 = vunpack.c.l.b16 %v332
        %v507 = vunpack.c.h.b16 %v332
        %v508 = vunpack.c.l.b16 %v333
        %v509 = vunpack.c.h.b16 %v333
        %v510 = vunpack.c.l.b16 %v334
        %v511 = vunpack.c.h.b16 %v334
        %v512 = vunpack.c.l.b16 %v335
        %v513 = vunpack.c.h.b16 %v335
        %v514 = vunpack.c.l.b16 %v336
        %v515 = vunpack.c.h.b16 %v336
        %v516 = vunpack.c.l.b16 %v337
        %v517 = vunpack.c.h.b16 %v337
        %v518 = vunpack.c.l.b16 %v338
        %v519 = vunpack.c.h.b16 %v338
        %v520 = vunpack.c.l.b16 %v339
        %v521 = vunpack.c.h.b16 %v339
        %v522 = vunpack.c.l.b16 %v340
        %v523 = vunpack.c.h.b16 %v340
        %v524 = vunpack.c.l.b16 %v341
        %v525 = vunpack.c.h.b16 %v341
        %v526 = vunpack.c.l.b16 %v342
        %v527 = vunpack.c.h.b16 %v342
        %v528 = vunpack.c.l.b16 %v343
        %v529 = vunpack.c.h.b16 %v343
        %v530 = vunpack.c.l.b16 %v344
        %v531 = vunpack.c.h.b16 %v344
        %v532 = vunpack.c.l.b16 %v345
        %v533 = vunpack.c.h.b16 %v345
        %v534 = vunpack.c.l.b16 %v346
        %v535 = vunpack.c.h.b16 %v346
        %v536 = vunpack.c.l.b16 %v347
        %v537 = vunpack.c.h.b16 %v347
        %v538 = vunpack.c.l.b16 %v348
        %v539 = vunpack.c.h.b16 %v348
        %v540 = vunpack.c.l.b16 %v349
        %v541 = vunpack.c.h.b16 %v349
        %v542 = vunpack.c.l.b16 %v350
        %v543 = vunpack.c.h.b16 %v350
        %v544 = vunpack.c.l.b16 %v351
        %v545 = vunpack.c.h.b16 %v351
        %v546 = vunpack.c.l.b16 %v352
        %v547 = vunpack.c.h.b16 %v352
        %v548 = vunpack.c.l.b16 %v353
        %v549 = vunpack.c.h.b16 %v353
        %v550 = vunpack.c.l.b16 %v354
        %v551 = vunpack.c.h.b16 %v354
        %v552 = vunpack.c.l.b16 %v355
        %v553 = vunpack.c.h.b16 %v355
        %v554 = vunpack.c.l.b16 %v356
        %v555 = vunpack.c.h.b16 %v356
        %v556 = vunpack.c.l.b16 %v357
        %v557 = vunpack.c.h.b16 %v357
        %v558 = vunpack.c.l.b16 %v358
        %v559 = vunpack.c.h.b16 %v358
        %v560 = vunpack.c.l.b16 %v359
        %v561 = vunpack.c.h.b16 %v359
        %v562 = vunpack.c.l.b16 %v360
        %v563 = vunpack.c.h.b16 %v360
        %v564 = vunpack.c.l.b16 %v361
        %v565 = vunpack.c.h.b16 %v361
        %v566 = vunpack.c.l.b16 %v362
        %v567 = vunpack.c.h.b16 %v362
        %v568 = vunpack.c.l.b16 %v363
        %v569 = vunpack.c.h.b16 %v363
        %v570 = vunpack.c.l.b16 %v364
        %v571 = vunpack.c.h.b16 %v364
        %v572 = vunpack.c.l.b16 %v365
        %v573 = vunpack.c.h.b16 %v365
        %v574 = vunpack.c.l.b16 %v366
        %v575 = vunpack.c.h.b16 %v366
        %v576 = vunpack.c.l.b16 %v367
        %v577 = vunpack.c.h.b16 %v367
        %v578 = vunpack.c.l.b16 %v368
        %v579 = vunpack.c.h.b16 %v368
        %v580 = vunpack.c.l.b16 %v369
        %v581 = vunpack.c.h.b16 %v369
        %v582 = vpack.c.b16 %v458, %v454
        %v583 = vpack.c.b16 %v459, %v455
        %v584 = vpack.c.b16 %v460, %v456
        %v585 = vpack.c.b16 %v461, %v457
        %v586 = vpack.c.b16 %v466, %v462
        %v587 = vpack.c.b16 %v467, %v463
        %v588 = vpack.c.b16 %v468, %v464
        %v589 = vpack.c.b16 %v469, %v465
        %v590 = vpack.c.b16 %v474, %v470
        %v591 = vpack.c.b16 %v475, %v471
        %v592 = vpack.c.b16 %v476, %v472
        %v593 = vpack.c.b16 %v477, %v473
        %v594 = vpack.c.b16 %v482, %v478
        %v595 = vpack.c.b16 %v483, %v479
        %v596 = vpack.c.b16 %v484, %v480
        %v597 = vpack.c.b16 %v485, %v481
        %v598 = vpack.c.b16 %v490, %v486
        %v599 = vpack.c.b16 %v491, %v487
        %v600 = vpack.c.b16 %v492, %v488
        %v601 = vpack.c.b16 %v493, %v489
        %v602 = vpack.c.b16 %v498, %v494
        %v603 = vpack.c.b16 %v499, %v495
        %v604 = vpack.c.b16 %v500, %v496
        %v605 = vpack.c.b16 %v501, %v497
        %v606 = vpack.c.b16 %v506, %v502
        %v607 = vpack.c.b16 %v507, %v503
        %v608 = vpack.c.b16 %v508, %v504
        %v609 = vpack.c.b16 %v509, %v505
        %v610 = vpack.c.b16 %v514, %v510
        %v611 = vpack.c.b16 %v515, %v511
        %v612 = vpack.c.b16 %v516, %v512
        %v613 = vpack.c.b16 %v517, %v513
        %v614 = vpack.c.b16 %v522, %v518
        %v615 = vpack.c.b16 %v523, %v519
        %v616 = vpack.c.b16 %v524, %v520
        %v617 = vpack.c.b16 %v525, %v521
        %v618 = vpack.c.b16 %v530, %v526
        %v619 = vpack.c.b16 %v531, %v527
        %v620 = vpack.c.b16 %v532, %v528
        %v621 = vpack.c.b16 %v533, %v529
        %v622 = vpack.c.b16 %v538, %v534
        %v623 = vpack.c.b16 %v539, %v535
        %v624 = vpack.c.b16 %v540, %v536
        %v625 = vpack.c.b16 %v541, %v537
        %v626 = vpack.c.b16 %v546, %v542
        %v627 = vpack.c.b16 %v547, %v543
        %v628 = vpack.c.b16 %v548, %v544
        %v629 = vpack.c.b16 %v549, %v545
        %v630 = vpack.c.b16 %v554, %v550
        %v631 = vpack.c.b16 %v555, %v551
        %v632 = vpack.c.b16 %v556, %v552
        %v633 = vpack.c.b16 %v557, %v553
        %v634 = vpack.c.b16 %v562, %v558
        %v635 = vpack.c.b16 %v563, %v559
        %v636 = vpack.c.b16 %v564, %v560
        %v637 = vpack.c.b16 %v565, %v561
        %v638 = vpack.c.b16 %v570, %v566
        %v639 = vpack.c.b16 %v571, %v567
        %v640 = vpack.c.b16 %v572, %v568
        %v641 = vpack.c.b16 %v573, %v569
        %v642 = vpack.c.b16 %v578, %v574
        %v643 = vpack.c.b16 %v579, %v575
        %v644 = vpack.c.b16 %v580, %v576
        %v645 = vpack.c.b16 %v581, %v577
        %710 = vmatpush.bf16.msra.mxu0 %v610
        %711 = vmatpush.bf16.msra.mxu0 %v606
        %712 = vmatpush.bf16.msra.mxu0 %v602
        %713 = vmatpush.bf16.msra.mxu0 %v598
        %714 = vmatpush.bf16.msra.mxu0 %v594
        %715 = vmatpush.bf16.msra.mxu0 %v590
        %716 = vmatpush.bf16.msra.mxu0 %v586
        %717 = vmatpush.bf16.msra.mxu0 %v582
        %718 = vmatmul.bf16.gmra.mxu0 %v382
        %v719 = vpop.f32.mrf.mxu0
        %v720 = vadd.f32 0.0, %v719
        %v721 = vpop.f32.mrf.mxu0
        %v722 = vadd.f32 0.0, %v721
        %723 = vmatmul.bf16.gmra.mxu0 %v384
        %v724 = vpop.f32.mrf.mxu0
        %v725 = vadd.f32 0.0, %v724
        %v726 = vpop.f32.mrf.mxu0
        %v727 = vadd.f32 0.0, %v726
        %728 = vdwg.mxu0
        %729 = vmatpush.bf16.msra.mxu0 %v642
        %730 = vmatpush.bf16.msra.mxu0 %v638
        %731 = vmatpush.bf16.msra.mxu0 %v634
        %732 = vmatpush.bf16.msra.mxu0 %v630
        %733 = vmatpush.bf16.msra.mxu0 %v626
        %734 = vmatpush.bf16.msra.mxu0 %v622
        %735 = vmatpush.bf16.msra.mxu0 %v618
        %736 = vmatpush.bf16.msra.mxu0 %v614
        %737 = vmatmul.bf16.gmra.mxu0 %v383
        %v738 = vpop.f32.mrf.mxu0
        %v739 = vadd.f32 %v720, %v738
        %v740 = vpop.f32.mrf.mxu0
        %v741 = vadd.f32 %v722, %v740
        %742 = vmatmul.bf16.gmra.mxu0 %v385
        %v743 = vpop.f32.mrf.mxu0
        %v744 = vadd.f32 %v725, %v743
        %v745 = vpop.f32.mrf.mxu0
        %v746 = vadd.f32 %v727, %v745
        %747 = vdwg.mxu0
        %748 = vmatpush.bf16.msra.mxu0 %v611
        %749 = vmatpush.bf16.msra.mxu0 %v607
        %750 = vmatpush.bf16.msra.mxu0 %v603
        %751 = vmatpush.bf16.msra.mxu0 %v599
        %752 = vmatpush.bf16.msra.mxu0 %v595
        %753 = vmatpush.bf16.msra.mxu0 %v591
        %754 = vmatpush.bf16.msra.mxu0 %v587
        %755 = vmatpush.bf16.msra.mxu0 %v583
        %756 = vmatmul.bf16.gmra.mxu0 %v382
        %v757 = vpop.f32.mrf.mxu0
        %v758 = vadd.f32 0.0, %v757
        %v759 = vpop.f32.mrf.mxu0
        %v760 = vadd.f32 0.0, %v759
        %761 = vmatmul.bf16.gmra.mxu0 %v384
        %v762 = vpop.f32.mrf.mxu0
        %v763 = vadd.f32 0.0, %v762
        %v764 = vpop.f32.mrf.mxu0
        %v765 = vadd.f32 0.0, %v764
        %766 = vdwg.mxu0
        %767 = vmatpush.bf16.msra.mxu0 %v643
        %768 = vmatpush.bf16.msra.mxu0 %v639
        %769 = vmatpush.bf16.msra.mxu0 %v635
        %770 = vmatpush.bf16.msra.mxu0 %v631
        %771 = vmatpush.bf16.msra.mxu0 %v627
        %772 = vmatpush.bf16.msra.mxu0 %v623
        %773 = vmatpush.bf16.msra.mxu0 %v619
        %774 = vmatpush.bf16.msra.mxu0 %v615
        %775 = vmatmul.bf16.gmra.mxu0 %v383
        %v776 = vpop.f32.mrf.mxu0
        %v777 = vadd.f32 %v758, %v776
        %v778 = vpop.f32.mrf.mxu0
        %v779 = vadd.f32 %v760, %v778
        %780 = vmatmul.bf16.gmra.mxu0 %v385
        %v781 = vpop.f32.mrf.mxu0
        %v782 = vadd.f32 %v763, %v781
        %v783 = vpop.f32.mrf.mxu0
        %v784 = vadd.f32 %v765, %v783
        %785 = vdwg.mxu0
        %786 = vmatpush.bf16.msra.mxu0 %v612
        %787 = vmatpush.bf16.msra.mxu0 %v608
        %788 = vmatpush.bf16.msra.mxu0 %v604
        %789 = vmatpush.bf16.msra.mxu0 %v600
        %790 = vmatpush.bf16.msra.mxu0 %v596
        %791 = vmatpush.bf16.msra.mxu0 %v592
        %792 = vmatpush.bf16.msra.mxu0 %v588
        %793 = vmatpush.bf16.msra.mxu0 %v584
        %794 = vmatmul.bf16.gmra.mxu0 %v382
        %v795 = vpop.f32.mrf.mxu0
        %v796 = vadd.f32 0.0, %v795
        %v797 = vpop.f32.mrf.mxu0
        %v798 = vadd.f32 0.0, %v797
        %799 = vmatmul.bf16.gmra.mxu0 %v384
        %v800 = vpop.f32.mrf.mxu0
        %v801 = vadd.f32 0.0, %v800
        %v802 = vpop.f32.mrf.mxu0
        %v803 = vadd.f32 0.0, %v802
        %804 = vdwg.mxu0
        %805 = vmatpush.bf16.msra.mxu0 %v644
        %806 = vmatpush.bf16.msra.mxu0 %v640
        %807 = vmatpush.bf16.msra.mxu0 %v636
        %808 = vmatpush.bf16.msra.mxu0 %v632
        %809 = vmatpush.bf16.msra.mxu0 %v628
        %810 = vmatpush.bf16.msra.mxu0 %v624
        %811 = vmatpush.bf16.msra.mxu0 %v620
        %812 = vmatpush.bf16.msra.mxu0 %v616
        %813 = vmatmul.bf16.gmra.mxu0 %v383
        %v814 = vpop.f32.mrf.mxu0
        %v815 = vadd.f32 %v796, %v814
        %v816 = vpop.f32.mrf.mxu0
        %v817 = vadd.f32 %v798, %v816
        %818 = vmatmul.bf16.gmra.mxu0 %v385
        %v819 = vpop.f32.mrf.mxu0
        %v820 = vadd.f32 %v801, %v819
        %v821 = vpop.f32.mrf.mxu0
        %v822 = vadd.f32 %v803, %v821
        %823 = vdwg.mxu0
        %824 = vmatpush.bf16.msra.mxu0 %v613
        %825 = vmatpush.bf16.msra.mxu0 %v609
        %826 = vmatpush.bf16.msra.mxu0 %v605
        %827 = vmatpush.bf16.msra.mxu0 %v601
        %828 = vmatpush.bf16.msra.mxu0 %v597
        %829 = vmatpush.bf16.msra.mxu0 %v593
        %830 = vmatpush.bf16.msra.mxu0 %v589
        %831 = vmatpush.bf16.msra.mxu0 %v585
        %832 = vmatmul.bf16.gmra.mxu0 %v382
        %v833 = vpop.f32.mrf.mxu0
        %v834 = vadd.f32 0.0, %v833
        %v835 = vpop.f32.mrf.mxu0
        %v836 = vadd.f32 0.0, %v835
        %837 = vmatmul.bf16.gmra.mxu0 %v384
        %v838 = vpop.f32.mrf.mxu0
        %v839 = vadd.f32 0.0, %v838
        %v840 = vpop.f32.mrf.mxu0
        %v841 = vadd.f32 0.0, %v840
        %842 = vdwg.mxu0
        %843 = vmatpush.bf16.msra.mxu0 %v645
        %844 = vmatpush.bf16.msra.mxu0 %v641
        %845 = vmatpush.bf16.msra.mxu0 %v637
        %846 = vmatpush.bf16.msra.mxu0 %v633
        %847 = vmatpush.bf16.msra.mxu0 %v629
        %848 = vmatpush.bf16.msra.mxu0 %v625
        %849 = vmatpush.bf16.msra.mxu0 %v621
        %850 = vmatpush.bf16.msra.mxu0 %v617
        %851 = vmatmul.bf16.gmra.mxu0 %v383
        %v852 = vpop.f32.mrf.mxu0
        %v853 = vadd.f32 %v834, %v852
        %v854 = vpop.f32.mrf.mxu0
        %v855 = vadd.f32 %v836, %v854
        %856 = vmatmul.bf16.gmra.mxu0 %v385
        %v857 = vpop.f32.mrf.mxu0
        %v858 = vadd.f32 %v839, %v857
        %v859 = vpop.f32.mrf.mxu0
        %v860 = vadd.f32 %v841, %v859
        %861 = vdwg.mxu0
        %v862 = vxor.u32 %v739, 2147483648
        %v863 = vxor.u32 %v777, 2147483648
        %v864 = vxor.u32 %v741, 2147483648
        %v865 = vxor.u32 %v779, 2147483648
        %v866 = vxor.u32 %v744, 2147483648
        %v867 = vxor.u32 %v782, 2147483648
        %v868 = vxor.u32 %v746, 2147483648
        %v869 = vxor.u32 %v784, 2147483648
        %v870 = vmul.f32 %v862, 1.442695
        %v871 = vpow.pop %v870
        %v872 = vmul.f32 %v863, 1.442695
        %v873 = vpow.pop %v872
        %v874 = vmul.f32 %v864, 1.442695
        %v875 = vpow.pop %v874
        %v876 = vmul.f32 %v865, 1.442695
        %v877 = vpow.pop %v876
        %v878 = vmul.f32 %v866, 1.442695
        %v879 = vpow.pop %v878
        %v880 = vmul.f32 %v867, 1.442695
        %v881 = vpow.pop %v880
        %v882 = vmul.f32 %v868, 1.442695
        %v883 = vpow.pop %v882
        %v884 = vmul.f32 %v869, 1.442695
        %v885 = vpow.pop %v884
        %v886 = vadd.f32 %v871, 1.0
        %v887 = vadd.f32 %v873, 1.0
        %v888 = vadd.f32 %v875, 1.0
        %v889 = vadd.f32 %v877, 1.0
        %v890 = vadd.f32 %v879, 1.0
        %v891 = vadd.f32 %v881, 1.0
        %v892 = vadd.f32 %v883, 1.0
        %v893 = vadd.f32 %v885, 1.0
        %v894 = vrcp.pop %v886
        %v895 = vmul.f32 %v886, %v894
        %v896 = vsub.f32 1.0, %v895
        %v897 = vmul.f32 %v894, %v896
        %v898 = vadd.f32 %v894, %v897
        %vm899 = vweird.f32 %v886
        %vm900 = vweird.f32 %v894
        %vm901 = vmor %vm899, %vm900
        %v902 = vsel %vm901, %v894, %v898
        %v903 = vand.u32 2147483647, %v886
        %vm904 = vcmp.eq.f32.partialorder %v903, 8.507059e+37
        %v905 = vand.u32 %v886, 2147483648
        %v906 = vor.u32 1.1754944e-38, %v905
        %v907 = vsel %vm904, %v906, %v902
        %v908 = vmul.f32 1.0, %v907
        %v909 = vrcp.pop %v887
        %v910 = vmul.f32 %v887, %v909
        %v911 = vsub.f32 1.0, %v910
        %v912 = vmul.f32 %v909, %v911
        %v913 = vadd.f32 %v909, %v912
        %vm914 = vweird.f32 %v887
        %vm915 = vweird.f32 %v909
        %vm916 = vmor %vm914, %vm915
        %v917 = vsel %vm916, %v909, %v913
        %v918 = vand.u32 2147483647, %v887
        %vm919 = vcmp.eq.f32.partialorder %v918, 8.507059e+37
        %v920 = vand.u32 %v887, 2147483648
        %v921 = vor.u32 1.1754944e-38, %v920
        %v922 = vsel %vm919, %v921, %v917
        %v923 = vmul.f32 1.0, %v922
        %v924 = vrcp.pop %v888
        %v925 = vmul.f32 %v888, %v924
        %v926 = vsub.f32 1.0, %v925
        %v927 = vmul.f32 %v924, %v926
        %v928 = vadd.f32 %v924, %v927
        %vm929 = vweird.f32 %v888
        %vm930 = vweird.f32 %v924
        %vm931 = vmor %vm929, %vm930
        %v932 = vsel %vm931, %v924, %v928
        %v933 = vand.u32 2147483647, %v888
        %vm934 = vcmp.eq.f32.partialorder %v933, 8.507059e+37
        %v935 = vand.u32 %v888, 2147483648
        %v936 = vor.u32 1.1754944e-38, %v935
        %v937 = vsel %vm934, %v936, %v932
        %v938 = vmul.f32 1.0, %v937
        %v939 = vrcp.pop %v889
        %v940 = vmul.f32 %v889, %v939
        %v941 = vsub.f32 1.0, %v940
        %v942 = vmul.f32 %v939, %v941
        %v943 = vadd.f32 %v939, %v942
        %vm944 = vweird.f32 %v889
        %vm945 = vweird.f32 %v939
        %vm946 = vmor %vm944, %vm945
        %v947 = vsel %vm946, %v939, %v943
        %v948 = vand.u32 2147483647, %v889
        %vm949 = vcmp.eq.f32.partialorder %v948, 8.507059e+37
        %v950 = vand.u32 %v889, 2147483648
        %v951 = vor.u32 1.1754944e-38, %v950
        %v952 = vsel %vm949, %v951, %v947
        %v953 = vmul.f32 1.0, %v952
        %v954 = vrcp.pop %v890
        %v955 = vmul.f32 %v890, %v954
        %v956 = vsub.f32 1.0, %v955
        %v957 = vmul.f32 %v954, %v956
        %v958 = vadd.f32 %v954, %v957
        %vm959 = vweird.f32 %v890
        %vm960 = vweird.f32 %v954
        %vm961 = vmor %vm959, %vm960
        %v962 = vsel %vm961, %v954, %v958
        %v963 = vand.u32 2147483647, %v890
        %vm964 = vcmp.eq.f32.partialorder %v963, 8.507059e+37
        %v965 = vand.u32 %v890, 2147483648
        %v966 = vor.u32 1.1754944e-38, %v965
        %v967 = vsel %vm964, %v966, %v962
        %v968 = vmul.f32 1.0, %v967
        %v969 = vrcp.pop %v891
        %v970 = vmul.f32 %v891, %v969
        %v971 = vsub.f32 1.0, %v970
        %v972 = vmul.f32 %v969, %v971
        %v973 = vadd.f32 %v969, %v972
        %vm974 = vweird.f32 %v891
        %vm975 = vweird.f32 %v969
        %vm976 = vmor %vm974, %vm975
        %v977 = vsel %vm976, %v969, %v973
        %v978 = vand.u32 2147483647, %v891
        %vm979 = vcmp.eq.f32.partialorder %v978, 8.507059e+37
        %v980 = vand.u32 %v891, 2147483648
        %v981 = vor.u32 1.1754944e-38, %v980
        %v982 = vsel %vm979, %v981, %v977
        %v983 = vmul.f32 1.0, %v982
        %v984 = vrcp.pop %v892
        %v985 = vmul.f32 %v892, %v984
        %v986 = vsub.f32 1.0, %v985
        %v987 = vmul.f32 %v984, %v986
        %v988 = vadd.f32 %v984, %v987
        %vm989 = vweird.f32 %v892
        %vm990 = vweird.f32 %v984
        %vm991 = vmor %vm989, %vm990
        %v992 = vsel %vm991, %v984, %v988
        %v993 = vand.u32 2147483647, %v892
        %vm994 = vcmp.eq.f32.partialorder %v993, 8.507059e+37
        %v995 = vand.u32 %v892, 2147483648
        %v996 = vor.u32 1.1754944e-38, %v995
        %v997 = vsel %vm994, %v996, %v992
        %v998 = vmul.f32 1.0, %v997
        %v999 = vrcp.pop %v893
        %v1000 = vmul.f32 %v893, %v999
        %v1001 = vsub.f32 1.0, %v1000
        %v1002 = vmul.f32 %v999, %v1001
        %v1003 = vadd.f32 %v999, %v1002
        %vm1004 = vweird.f32 %v893
        %vm1005 = vweird.f32 %v999
        %vm1006 = vmor %vm1004, %vm1005
        %v1007 = vsel %vm1006, %v999, %v1003
        %v1008 = vand.u32 2147483647, %v893
        %vm1009 = vcmp.eq.f32.partialorder %v1008, 8.507059e+37
        %v1010 = vand.u32 %v893, 2147483648
        %v1011 = vor.u32 1.1754944e-38, %v1010
        %v1012 = vsel %vm1009, %v1011, %v1007
        %v1013 = vmul.f32 1.0, %v1012
        %v1014 = vmul.f32 %v739, %v908
        %v1015 = vmul.f32 %v777, %v923
        %v1016 = vmul.f32 %v741, %v938
        %v1017 = vmul.f32 %v779, %v953
        %v1018 = vmul.f32 %v744, %v968
        %v1019 = vmul.f32 %v782, %v983
        %v1020 = vmul.f32 %v746, %v998
        %v1021 = vmul.f32 %v784, %v1013
        %v1022 = vmul.f32 %v1014, %v815
        %v1023 = vmul.f32 %v1015, %v853
        %v1024 = vmul.f32 %v1016, %v817
        %v1025 = vmul.f32 %v1017, %v855
        %v1026 = vmul.f32 %v1018, %v820
        %v1027 = vmul.f32 %v1019, %v858
        %v1028 = vmul.f32 %v1020, %v822
        %v1029 = vmul.f32 %v1021, %v860
        %v1030 = vld [vmem:[#allocation2] sm:$0xff]
        %v1031 = vld [vmem:[#allocation2 + $0x8] sm:$0xff]
        %v1032 = vld [vmem:[#allocation2 + $0x10] sm:$0xff]
        %v1033 = vld [vmem:[#allocation2 + $0x18] sm:$0xff]
        %v1034 = vld [vmem:[#allocation2 + $0x20] sm:$0xff]
        %v1035 = vld [vmem:[#allocation2 + $0x28] sm:$0xff]
        %v1036 = vld [vmem:[#allocation2 + $0x30] sm:$0xff]
        %v1037 = vld [vmem:[#allocation2 + $0x38] sm:$0xff]
        %v1038 = vpack.c.bf16 %v1024, %v1022
        %v1039 = vpack.c.bf16 %v1025, %v1023
        %v1040 = vpack.c.bf16 %v1028, %v1026
        %v1041 = vpack.c.bf16 %v1029, %v1027
        %v1042 = vld [vmem:[%s252] sm:$0xff]
        %v1043 = vld [vmem:[%s252 + $0x8] sm:$0xff]
        %v1044 = vld [vmem:[%s252 + $0x10] sm:$0xff]
        %v1045 = vld [vmem:[%s252 + $0x18] sm:$0xff]
        %v1046 = vld [vmem:[%s252 + $0x20] sm:$0xff]
        %v1047 = vld [vmem:[%s252 + $0x28] sm:$0xff]
        %v1048 = vld [vmem:[%s252 + $0x30] sm:$0xff]
        %v1049 = vld [vmem:[%s252 + $0x38] sm:$0xff]
        %v1050 = vld [vmem:[%s252 + $0x40] sm:$0xff]
        %v1051 = vld [vmem:[%s252 + $0x48] sm:$0xff]
        %v1052 = vld [vmem:[%s252 + $0x50] sm:$0xff]
        %v1053 = vld [vmem:[%s252 + $0x58] sm:$0xff]
        %v1054 = vld [vmem:[%s252 + $0x60] sm:$0xff]
        %v1055 = vld [vmem:[%s252 + $0x68] sm:$0xff]
        %v1056 = vld [vmem:[%s252 + $0x70] sm:$0xff]
        %v1057 = vld [vmem:[%s252 + $0x78] sm:$0xff]
        %v1058 = vld [vmem:[%s252 + $0x80] sm:$0xff]
        %v1059 = vld [vmem:[%s252 + $0x88] sm:$0xff]
        %v1060 = vld [vmem:[%s252 + $0x90] sm:$0xff]
        %v1061 = vld [vmem:[%s252 + $0x98] sm:$0xff]
        %v1062 = vld [vmem:[%s252 + $0xa0] sm:$0xff]
        %v1063 = vld [vmem:[%s252 + $0xa8] sm:$0xff]
        %v1064 = vld [vmem:[%s252 + $0xb0] sm:$0xff]
        %v1065 = vld [vmem:[%s252 + $0xb8] sm:$0xff]
        %v1066 = vld [vmem:[%s252 + $0xc0] sm:$0xff]
        %v1067 = vld [vmem:[%s252 + $0xc8] sm:$0xff]
        %v1068 = vld [vmem:[%s252 + $0xd0] sm:$0xff]
        %v1069 = vld [vmem:[%s252 + $0xd8] sm:$0xff]
        %v1070 = vld [vmem:[%s252 + $0xe0] sm:$0xff]
        %v1071 = vld [vmem:[%s252 + $0xe8] sm:$0xff]
        %v1072 = vld [vmem:[%s252 + $0xf0] sm:$0xff]
        %v1073 = vld [vmem:[%s252 + $0xf8] sm:$0xff]
        %v1106 = vunpack.c.l.b16 %v1042
        %v1107 = vunpack.c.h.b16 %v1042
        %v1108 = vunpack.c.l.b16 %v1043
        %v1109 = vunpack.c.h.b16 %v1043
        %v1110 = vunpack.c.l.b16 %v1044
        %v1111 = vunpack.c.h.b16 %v1044
        %v1112 = vunpack.c.l.b16 %v1045
        %v1113 = vunpack.c.h.b16 %v1045
        %v1114 = vunpack.c.l.b16 %v1046
        %v1115 = vunpack.c.h.b16 %v1046
        %v1116 = vunpack.c.l.b16 %v1047
        %v1117 = vunpack.c.h.b16 %v1047
        %v1118 = vunpack.c.l.b16 %v1048
        %v1119 = vunpack.c.h.b16 %v1048
        %v1120 = vunpack.c.l.b16 %v1049
        %v1121 = vunpack.c.h.b16 %v1049
        %v1122 = vunpack.c.l.b16 %v1050
        %v1123 = vunpack.c.h.b16 %v1050
        %v1124 = vunpack.c.l.b16 %v1051
        %v1125 = vunpack.c.h.b16 %v1051
        %v1126 = vunpack.c.l.b16 %v1052
        %v1127 = vunpack.c.h.b16 %v1052
        %v1128 = vunpack.c.l.b16 %v1053
        %v1129 = vunpack.c.h.b16 %v1053
        %v1130 = vunpack.c.l.b16 %v1054
        %v1131 = vunpack.c.h.b16 %v1054
        %v1132 = vunpack.c.l.b16 %v1055
        %v1133 = vunpack.c.h.b16 %v1055
        %v1134 = vunpack.c.l.b16 %v1056
        %v1135 = vunpack.c.h.b16 %v1056
        %v1136 = vunpack.c.l.b16 %v1057
        %v1137 = vunpack.c.h.b16 %v1057
        %v1138 = vunpack.c.l.b16 %v1058
        %v1139 = vunpack.c.h.b16 %v1058
        %v1140 = vunpack.c.l.b16 %v1059
        %v1141 = vunpack.c.h.b16 %v1059
        %v1142 = vunpack.c.l.b16 %v1060
        %v1143 = vunpack.c.h.b16 %v1060
        %v1144 = vunpack.c.l.b16 %v1061
        %v1145 = vunpack.c.h.b16 %v1061
        %v1146 = vunpack.c.l.b16 %v1062
        %v1147 = vunpack.c.h.b16 %v1062
        %v1148 = vunpack.c.l.b16 %v1063
        %v1149 = vunpack.c.h.b16 %v1063
        %v1150 = vunpack.c.l.b16 %v1064
        %v1151 = vunpack.c.h.b16 %v1064
        %v1152 = vunpack.c.l.b16 %v1065
        %v1153 = vunpack.c.h.b16 %v1065
        %v1154 = vunpack.c.l.b16 %v1066
        %v1155 = vunpack.c.h.b16 %v1066
        %v1156 = vunpack.c.l.b16 %v1067
        %v1157 = vunpack.c.h.b16 %v1067
        %v1158 = vunpack.c.l.b16 %v1068
        %v1159 = vunpack.c.h.b16 %v1068
        %v1160 = vunpack.c.l.b16 %v1069
        %v1161 = vunpack.c.h.b16 %v1069
        %v1162 = vunpack.c.l.b16 %v1070
        %v1163 = vunpack.c.h.b16 %v1070
        %v1164 = vunpack.c.l.b16 %v1071
        %v1165 = vunpack.c.h.b16 %v1071
        %v1166 = vunpack.c.l.b16 %v1072
        %v1167 = vunpack.c.h.b16 %v1072
        %v1168 = vunpack.c.l.b16 %v1073
        %v1169 = vunpack.c.h.b16 %v1073
        %v1170 = vpack.c.b16 %v1108, %v1106
        %v1171 = vpack.c.b16 %v1109, %v1107
        %v1172 = vpack.c.b16 %v1112, %v1110
        %v1173 = vpack.c.b16 %v1113, %v1111
        %v1174 = vpack.c.b16 %v1116, %v1114
        %v1175 = vpack.c.b16 %v1117, %v1115
        %v1176 = vpack.c.b16 %v1120, %v1118
        %v1177 = vpack.c.b16 %v1121, %v1119
        %v1178 = vpack.c.b16 %v1124, %v1122
        %v1179 = vpack.c.b16 %v1125, %v1123
        %v1180 = vpack.c.b16 %v1128, %v1126
        %v1181 = vpack.c.b16 %v1129, %v1127
        %v1182 = vpack.c.b16 %v1132, %v1130
        %v1183 = vpack.c.b16 %v1133, %v1131
        %v1184 = vpack.c.b16 %v1136, %v1134
        %v1185 = vpack.c.b16 %v1137, %v1135
        %v1186 = vpack.c.b16 %v1140, %v1138
        %v1187 = vpack.c.b16 %v1141, %v1139
        %v1188 = vpack.c.b16 %v1144, %v1142
        %v1189 = vpack.c.b16 %v1145, %v1143
        %v1190 = vpack.c.b16 %v1148, %v1146
        %v1191 = vpack.c.b16 %v1149, %v1147
        %v1192 = vpack.c.b16 %v1152, %v1150
        %v1193 = vpack.c.b16 %v1153, %v1151
        %v1194 = vpack.c.b16 %v1156, %v1154
        %v1195 = vpack.c.b16 %v1157, %v1155
        %v1196 = vpack.c.b16 %v1160, %v1158
        %v1197 = vpack.c.b16 %v1161, %v1159
        %v1198 = vpack.c.b16 %v1164, %v1162
        %v1199 = vpack.c.b16 %v1165, %v1163
        %v1200 = vpack.c.b16 %v1168, %v1166
        %v1201 = vpack.c.b16 %v1169, %v1167
        %1234 = vmatpush.bf16.msra.mxu0 %v1184
        %1235 = vmatpush.bf16.msra.mxu0 %v1182
        %1236 = vmatpush.bf16.msra.mxu0 %v1180
        %1237 = vmatpush.bf16.msra.mxu0 %v1178
        %1238 = vmatpush.bf16.msra.mxu0 %v1176
        %1239 = vmatpush.bf16.msra.mxu0 %v1174
        %1240 = vmatpush.bf16.msra.mxu0 %v1172
        %1241 = vmatpush.bf16.msra.mxu0 %v1170
        %1242 = vmatmul.bf16.gmra.mxu0 %v1038
        %v1243 = vpop.f32.mrf.mxu0
        %v1244 = vadd.f32 0.0, %v1243
        %v1245 = vpop.f32.mrf.mxu0
        %v1246 = vadd.f32 0.0, %v1245
        %1247 = vmatmul.bf16.gmra.mxu0 %v1040
        %v1248 = vpop.f32.mrf.mxu0
        %v1249 = vadd.f32 0.0, %v1248
        %v1250 = vpop.f32.mrf.mxu0
        %v1251 = vadd.f32 0.0, %v1250
        %1252 = vdwg.mxu0
        %1253 = vmatpush.bf16.msra.mxu0 %v1200
        %1254 = vmatpush.bf16.msra.mxu0 %v1198
        %1255 = vmatpush.bf16.msra.mxu0 %v1196
        %1256 = vmatpush.bf16.msra.mxu0 %v1194
        %1257 = vmatpush.bf16.msra.mxu0 %v1192
        %1258 = vmatpush.bf16.msra.mxu0 %v1190
        %1259 = vmatpush.bf16.msra.mxu0 %v1188
        %1260 = vmatpush.bf16.msra.mxu0 %v1186
        %1261 = vmatmul.bf16.gmra.mxu0 %v1039
        %v1262 = vpop.f32.mrf.mxu0
        %v1263 = vadd.f32 %v1244, %v1262
        %v1264 = vpop.f32.mrf.mxu0
        %v1265 = vadd.f32 %v1246, %v1264
        %1266 = vmatmul.bf16.gmra.mxu0 %v1041
        %v1267 = vpop.f32.mrf.mxu0
        %v1268 = vadd.f32 %v1249, %v1267
        %v1269 = vpop.f32.mrf.mxu0
        %v1270 = vadd.f32 %v1251, %v1269
        %1271 = vdwg.mxu0
        %1272 = vmatpush.bf16.msra.mxu0 %v1185
        %1273 = vmatpush.bf16.msra.mxu0 %v1183
        %1274 = vmatpush.bf16.msra.mxu0 %v1181
        %1275 = vmatpush.bf16.msra.mxu0 %v1179
        %1276 = vmatpush.bf16.msra.mxu0 %v1177
        %1277 = vmatpush.bf16.msra.mxu0 %v1175
        %1278 = vmatpush.bf16.msra.mxu0 %v1173
        %1279 = vmatpush.bf16.msra.mxu0 %v1171
        %1280 = vmatmul.bf16.gmra.mxu0 %v1038
        %v1281 = vpop.f32.mrf.mxu0
        %v1282 = vadd.f32 0.0, %v1281
        %v1283 = vpop.f32.mrf.mxu0
        %v1284 = vadd.f32 0.0, %v1283
        %1285 = vmatmul.bf16.gmra.mxu0 %v1040
        %v1286 = vpop.f32.mrf.mxu0
        %v1287 = vadd.f32 0.0, %v1286
        %v1288 = vpop.f32.mrf.mxu0
        %v1289 = vadd.f32 0.0, %v1288
        %1290 = vdwg.mxu0
        %1291 = vmatpush.bf16.msra.mxu0 %v1201
        %1292 = vmatpush.bf16.msra.mxu0 %v1199
        %1293 = vmatpush.bf16.msra.mxu0 %v1197
        %1294 = vmatpush.bf16.msra.mxu0 %v1195
        %1295 = vmatpush.bf16.msra.mxu0 %v1193
        %1296 = vmatpush.bf16.msra.mxu0 %v1191
        %1297 = vmatpush.bf16.msra.mxu0 %v1189
        %1298 = vmatpush.bf16.msra.mxu0 %v1187
        %1299 = vmatmul.bf16.gmra.mxu0 %v1039
        %v1300 = vpop.f32.mrf.mxu0
        %v1301 = vadd.f32 %v1282, %v1300
        %v1302 = vpop.f32.mrf.mxu0
        %v1303 = vadd.f32 %v1284, %v1302
        %1304 = vmatmul.bf16.gmra.mxu0 %v1041
        %v1305 = vpop.f32.mrf.mxu0
        %v1306 = vadd.f32 %v1287, %v1305
        %v1307 = vpop.f32.mrf.mxu0
        %v1308 = vadd.f32 %v1289, %v1307
        %1309 = vdwg.mxu0
        %v1310 = vadd.f32 %v1030, %v1263
        %v1311 = vadd.f32 %v1031, %v1301
        %v1312 = vadd.f32 %v1032, %v1265
        %v1313 = vadd.f32 %v1033, %v1303
        %v1314 = vadd.f32 %v1034, %v1268
        %v1315 = vadd.f32 %v1035, %v1306
        %v1316 = vadd.f32 %v1036, %v1270
        %v1317 = vadd.f32 %v1037, %v1308
        %1318 = vst [vmem:[#allocation2] sm:$0xff] %v1310
        %1319 = vst [vmem:[#allocation2 + $0x8] sm:$0xff] %v1311
        %1320 = vst [vmem:[#allocation2 + $0x10] sm:$0xff] %v1312
        %1321 = vst [vmem:[#allocation2 + $0x18] sm:$0xff] %v1313
        %1322 = vst [vmem:[#allocation2 + $0x20] sm:$0xff] %v1314
        %1323 = vst [vmem:[#allocation2 + $0x28] sm:$0xff] %v1315
        %1324 = vst [vmem:[#allocation2 + $0x30] sm:$0xff] %v1316
        %1325 = vst [vmem:[#allocation2 + $0x38] sm:$0xff] %v1317
        %p1326 = scmp.eq.s32.totalorder %s28, 1
        // Predicated region
        $region49: #{tpu_custom_call.1} parent=31 // pred_check
          %p1327 = pneg %p1326
        $region50: #{tpu_custom_call.1} parent=31 // pred_check_branch
          %1329 = sbr.rel (%p1327) target = $region52
        $region51: #{tpu_custom_call.1} parent=31 // pred_region
          %v1330 = vld [vmem:[#allocation2] sm:$0xff]
          %v1331 = vld [vmem:[#allocation2 + $0x8] sm:$0xff]
          %v1332 = vld [vmem:[#allocation2 + $0x10] sm:$0xff]
          %v1333 = vld [vmem:[#allocation2 + $0x18] sm:$0xff]
          %v1334 = vld [vmem:[#allocation2 + $0x20] sm:$0xff]
          %v1335 = vld [vmem:[#allocation2 + $0x28] sm:$0xff]
          %v1336 = vld [vmem:[#allocation2 + $0x30] sm:$0xff]
          %v1337 = vld [vmem:[#allocation2 + $0x38] sm:$0xff]
          %v1338 = vpack.c.bf16 %v1331, %v1330
          %v1339 = vpack.c.bf16 %v1333, %v1332
          %v1340 = vpack.c.bf16 %v1335, %v1334
          %v1341 = vpack.c.bf16 %v1337, %v1336
          %1342 = vst [vmem:[%s285] sm:$0xff] %v1338
          %1343 = vst [vmem:[%s285 + $0x8] sm:$0xff] %v1339
          %1344 = vst [vmem:[%s285 + $0x10] sm:$0xff] %v1340
          %1345 = vst [vmem:[%s285 + $0x18] sm:$0xff] %v1341
        $region52: #{tpu_custom_call.1} parent=31 // pred_fallthru
          _
        %s1346 = sand.u32 %s121, 1
        %s1347 = scalar_lea.sflag [#allocation5], %s1346
        %s1348 = sand.u32 %s121, 1
        %s1349 = smul.addr %s1348, 32
        %s1350 = scalar_lea.vmem [#allocation9], %s1349
        // Predicated region
        $region53: #{tpu_custom_call.1} parent=31 // pred_check
          %p1351 = pneg %p131
        $region54: #{tpu_custom_call.1} parent=31 // pred_check_branch
          %1353 = sbr.rel (%p1351) target = $region56
        $region55: #{tpu_custom_call.1} parent=31 // pred_region
          %s1354 = smul.u32 4, %s27
          %1356 = vsyncadd %s1347, 0
          %s1357 = smul.addr %s1354, 2
          %s1358 = smul.addr %s1357, 4
          %s1359 = scalar_lea.hbm %s3, %s1358
          %s1360 = sshll.u32 %s1350, 4
          %s1361 = int_to_ptr.vmem [resolvable:$true] %s1360
          %s1362 = sshll.u32 %s1359, 4
          %s1363 = int_to_ptr.hbm [resolvable:$true] %s1362
          %1368 = dma.vmem_to_hbm [thread:$0]  %s1361, 512, %s1363, %s1347, 128, 128, 8
        $region56: #{tpu_custom_call.1} parent=31 // pred_fallthru
          _
      $region32: #{tpu_custom_call.1} parent=5 // pred_fallthru
        _
      %p1369 = scmp.le.s32.totalorder 2, %s18
      // Predicated region
      $region57: #{tpu_custom_call.1} parent=5 // pred_check
        %p1370 = pneg %p1369
      $region58: #{tpu_custom_call.1} parent=5 // pred_check_branch
        %1372 = sbr.rel (%p1370) target = $region60
      $region59: #{tpu_custom_call.1} parent=5 // pred_region
        %s1373 = ssub.s32 %s18, 2
        // Predicated region
        $region61: #{tpu_custom_call.1} parent=59 // pred_check
          %p1374 = pneg %p137
        $region62: #{tpu_custom_call.1} parent=59 // pred_check_branch
          %1376 = sbr.rel (%p1374) target = $region64
        $region63: #{tpu_custom_call.1} parent=59 // pred_region
          %s1377 = sand.u32 %s122, 1
          %s1378 = scalar_lea.sflag [#allocation5], %s1377
          %s1379 = sand.u32 %s122, 1
          %s1380 = smul.addr %s1379, 32
          %s1381 = scalar_lea.vmem [#allocation9], %s1380
          %1383 = dma.done %s1378, 512
        $region64: #{tpu_custom_call.1} parent=59 // pred_fallthru
          _
      $region60: #{tpu_custom_call.1} parent=5 // pred_fallthru
        _
    $region6: #{tpu_custom_call.1} parent=1 // loop_footer
      %s22 = sadd.s32 1, %s18
    $region7: #{tpu_custom_call.1} parent=1 // loop_footer_branch
      %17 = sbr.rel target = $region3
    $region8: #{tpu_custom_call.1} parent=1 // loop_exit
      _
    %1384 = vsyncpa [#allocation4], 1
    %s1385 = scalar_lea.sflag [#allocation4], 1
    %1386 = vsyncpa %s1385, 1
    %1387 = vsyncpa [#allocation7], 1
    %s1388 = scalar_lea.sflag [#allocation7], 1
    %1389 = vsyncpa %s1388, 1
    %1390 = vsyncpa [#allocation5], 1
    %s1391 = scalar_lea.sflag [#allocation5], 1
    %1392 = vsyncpa %s1391, 1

</llo_original>
